<compile_context>
chip_gen: v7x
topology: tpu7x:2x2x1
jax: 0.10.0
libtpu: 0.0.40
codegen_flags: <defaults>
</compile_context>

<pallas_src>
import math

import jax
import jax.numpy as jnp
from jax.experimental import pallas as pl
from jax.experimental.pallas import tpu as pltpu


def _rope_kernel(x_ref, sig_ref, o_ref):
    # x_ref / o_ref: (TILE_S, D) -- batch dim squeezed away by the BlockSpec.
    # sig_ref:       (TILE_S, D) -- positional signal tile, resident across
    #                               the inner batch axis (same block index).
    o_ref[...] = (x_ref[...] * sig_ref[...]).astype(o_ref.dtype)


def make_rotary_signal(d_model: int, dim_head: int, n_ctx: int,
                       dtype=jnp.float32) -> jnp.ndarray:
    """Buffer setup (plain JAX glue, mirrors the module's __init__)."""
    num_timescales = d_model // dim_head
    denom = max(num_timescales - 1, 1)  # guard num_timescales == 1
    position = jnp.arange(0, n_ctx, dtype=jnp.float32)                    # (n_ctx,)
    # Literal transcription of the reference: 1 / exp(k * -log(1e4)/(T-1)).
    inv_timescales = 1.0 / jnp.exp(
        jnp.arange(0, num_timescales, dtype=jnp.float32)
        * (-math.log(10000.0) / denom)
    )                                                                      # (T,)
    # TODO(synk): the PyTorch reference multiplies two 1-D tensors of different
    # lengths and cats on dim=1 (does not type-check as written); we implement
    # the intended outer-product semantics: signal[p] = [sin(p*w), cos(p*w)].
    scaled_time = position[:, None] * inv_timescales[None, :]              # (n_ctx, T)
    signal = jnp.concatenate([jnp.sin(scaled_time), jnp.cos(scaled_time)], axis=1)
    return signal.astype(dtype)                                            # (n_ctx, 2T)


def _vmem_budget_bytes() -> int:
    """Per-generation VMEM budget for the kernel's working set."""
    try:
        cap = pltpu.get_tpu_info().vmem_capacity_bytes
    except Exception:
        cap = 64 << 20  # conservative fallback (v7x-sized)
    if cap <= (64 << 20):
        return 24 << 20   # v7x-class: 64 MiB physical per TC -> stay well clear
    return 48 << 20       # v5e/v6e: 128 MiB physical


def _fold_factor(n_ctx: int, d: int) -> int:
    """Smallest f with (f*d) % 128 == 0 and n_ctx % f == 0 (lane-dense stores)."""
    if d % 128 == 0:
        return 1
    f = 128 // math.gcd(d, 128)
    return f if (n_ctx % f == 0) else 1


def _pick_tile(n_s: int, d_f: int, itemsize: int, budget: int,
               tile_s: int | None) -> int:
    row_mult = max(8, 32 // itemsize)   # 8 rows f32, 16 bf16, 32 int8 packing
    if tile_s is None:
        ts = budget // (6 * d_f * itemsize)       # 6 double-buffered (ts, d) bufs
        ts = max(row_mult, (ts // row_mult) * row_mult)
        ts = min(ts, 4096)                        # diminishing returns past this
    else:
        ts = tile_s
    if ts >= n_s:
        return n_s                                # full extent is always legal
    return max(row_mult, (ts // row_mult) * row_mult)


def rotary_forward(x: jnp.ndarray, signal: jnp.ndarray, *, tile_s: int | None = None):
    """x: (batch, n_ctx, 2*num_timescales); signal: (n_ctx, 2*num_timescales)."""
    b, n_ctx, d = x.shape
    assert signal.shape == (n_ctx, d)

    # Matched dtypes: no mixed-dtype multiply, halves signal traffic for bf16.
    signal = signal.astype(x.dtype)

    # Lane-density guard: fold seq rows into lanes if d is not 128-aligned.
    f = _fold_factor(n_ctx, d)
    n_s, d_f = n_ctx // f, d * f
    xf = x.reshape(b, n_s, d_f)
    sigf = signal.reshape(n_s, d_f)

    itemsize = jnp.dtype(x.dtype).itemsize
    budget = _vmem_budget_bytes()
    ts = _pick_tile(n_s, d_f, itemsize, budget, tile_s)

    # Grid: seq-tiles OUTER (parallel / megacore-shardable), batch INNER
    # (arbitrary). The signal block index depends only on the seq-tile index,
    # so it is revisited (no re-DMA) across the inner batch loop.
    grid = (pl.cdiv(n_s, ts), b)

    vmem_limit = int(budget + (8 << 20))

    out = pl.pallas_call(
        _rope_kernel,
        out_shape=jax.ShapeDtypeStruct((b, n_s, d_f), x.dtype),
        grid_spec=pltpu.PrefetchScalarGridSpec(
            num_scalar_prefetch=0,
            grid=grid,
            in_specs=[
                pl.BlockSpec((pl.Squeezed(), ts, d_f), lambda j, i: (i, j, 0)),
                pl.BlockSpec((ts, d_f), lambda j, i: (j, 0)),
            ],
            out_specs=pl.BlockSpec((pl.Squeezed(), ts, d_f), lambda j, i: (i, j, 0)),
        ),
        compiler_params=pltpu.CompilerParams(
            dimension_semantics=("parallel", "arbitrary"),
            vmem_limit_bytes=vmem_limit,
        ),
    )(xf, sigf)

    return out.reshape(b, n_ctx, d)


if __name__ == "__main__":
    # Small shapes consistent with the module: d_model=256, dim_head=2
    # -> num_timescales = 128, feature dim of x = 2*128 = 256 (lane-dense).
    d_model, dim_head, n_ctx, batch = 256, 2, 16, 2

    signal = make_rotary_signal(d_model, dim_head, n_ctx)       # (16, 256) f32

    key = jax.random.PRNGKey(0)
    x = jax.random.normal(key, (batch, n_ctx, 2 * (d_model // dim_head)),
                          dtype=jnp.float32)                    # (2, 16, 256)

    # tile_s=8 so the small demo exercises the (seq-tile, batch) grid with a
    # resident signal block: grid = (2, 2). Production default is adaptive.
    out = rotary_forward(x, signal, tile_s=8)
    out = jax.block_until_ready(out)

    # Sanity check against plain-JAX reference (the module's forward).
    ref = x * signal[None, :, :].astype(x.dtype)
    assert jnp.allclose(out, ref, atol=1e-6, rtol=1e-6)

    # Also exercise the adaptive-tile path (full-extent tile here).
    out2 = jax.block_until_ready(rotary_forward(x, signal))
    assert jnp.allclose(out2, ref, atol=1e-6, rtol=1e-6)

    print("KERNEL_OK")
</pallas_src>

<mosaic_0001>
module attributes {stable_mosaic.version = 11 : i64} {
  func.func @_rope_kernel(%arg0: i32, %arg1: i32, %arg2: memref<1x8x256xf32, #tpu.memory_space<vmem>>, %arg3: memref<8x256xf32, #tpu.memory_space<vmem>>, %arg4: memref<1x8x256xf32, #tpu.memory_space<vmem>>) attributes {dimension_semantics = [#tpu.dimension_semantics<parallel>, #tpu.dimension_semantics<arbitrary>], iteration_bounds = array<i64: 2, 2>, scalar_prefetch = 0 : i64, scratch_operands = 0 : i64, tpu.core_type = #tpu.core_type<tc>, window_params = [{transform_indices = @transform_0, window_bounds = array<i64: 1, 8, 256>}, {transform_indices = @transform_1, window_bounds = array<i64: 8, 256>}, {transform_indices = @transform_2, window_bounds = array<i64: 1, 8, 256>}]} {
    %c0 = arith.constant 0 : index
    %c0_0 = arith.constant 0 : index
    %c0_1 = arith.constant 0 : index
    %0 = vector.load %arg2[%c0, %c0_0, %c0_1] : memref<1x8x256xf32, #tpu.memory_space<vmem>>, vector<1x8x256xf32>
    %1 = vector.shape_cast %0 : vector<1x8x256xf32> to vector<8x256xf32>
    %c0_2 = arith.constant 0 : index
    %c0_3 = arith.constant 0 : index
    %2 = vector.load %arg3[%c0_2, %c0_3] : memref<8x256xf32, #tpu.memory_space<vmem>>, vector<8x256xf32>
    %3 = arith.mulf %1, %2 : vector<8x256xf32>
    %c0_4 = arith.constant 0 : index
    %c0_5 = arith.constant 0 : index
    %c0_6 = arith.constant 0 : index
    %4 = vector.load %arg4[%c0_4, %c0_5, %c0_6] : memref<1x8x256xf32, #tpu.memory_space<vmem>>, vector<1x8x256xf32>
    %5 = vector.shape_cast %4 : vector<1x8x256xf32> to vector<8x256xf32>
    %6 = vector.shape_cast %3 : vector<8x256xf32> to vector<1x8x256xf32>
    tpu.vector_store %arg4[%c0_4, %c0_5, %c0_6], %6 {strides = array<i32>} : memref<1x8x256xf32, #tpu.memory_space<vmem>>, vector<1x8x256xf32>,
    return
  }
  func.func @transform_0(%arg0: i32, %arg1: i32) -> (i32, i32, i32) {
    %c0_i32 = arith.constant 0 : i32
    %c0_i32_0 = arith.constant 0 : i32
    return %arg1, %arg0, %c0_i32 : i32, i32, i32
  }
  func.func @transform_1(%arg0: i32, %arg1: i32) -> (i32, i32) {
    %c0_i32 = arith.constant 0 : i32
    %c0_i32_0 = arith.constant 0 : i32
    return %arg0, %c0_i32 : i32, i32
  }
  func.func @transform_2(%arg0: i32, %arg1: i32) -> (i32, i32, i32) {
    %c0_i32 = arith.constant 0 : i32
    %c0_i32_0 = arith.constant 0 : i32
    return %arg1, %arg0, %c0_i32 : i32, i32, i32
  }
}

</mosaic_0001>

<llo_original>
// kernel: tpu_custom_call.1
$region0: #{tpu_custom_call.1}
  #allocation0 [shape = 'u32[]', space=smem, size = 0x4, offset = 0x4, fixed_abs, tag = 'smem constant byte address 0x4 - core index']
  #allocation1 [shape = 'u32[144,128]{1,0:T(1,128)}', space=vmem, size = 0x12000, scoped, tag = 'internal scratch']
  %s0 = inlined_call_operand.hbm [shape: f32[2,16,256], index: 0, kind: input, shape index: {}]
  %s1 = inlined_call_operand.hbm [shape: f32[16,256], index: 1, kind: input, shape index: {}]
  %s2 = inlined_call_operand.hbm [shape: f32[2,16,256], index: 2, kind: output, shape index: {}]
  %s3 = sld [smem:[#allocation0]]
  $region49: #{tpu_custom_call.1} parent=0
    _
  %s5 = ssub.s32 1, %s3
  %s6 = scalar_select 0, %s5, %s3
  $region1: #{tpu_custom_call.1} parent=0
    #allocation2 [shape = 'u8[16384]{0}', space=vmem, size = 0x4000, scoped, tag = 'input window, operand 0']
    #allocation3 [shape = 's32[2]{0}', space=sflag, size = 0x8, scoped, tag = 'scoped memory for tpu_custom_call.1']
    #allocation4 [shape = 's32[2]{0}', space=sflag, size = 0x8, scoped, tag = 'scoped memory for tpu_custom_call.1']
    #allocation5 [shape = 'u8[16384]{0}', space=vmem, size = 0x4000, scoped, tag = 'input window, operand 1']
    #allocation6 [shape = 's32[2]{0}', space=sflag, size = 0x8, scoped, tag = 'scoped memory for tpu_custom_call.1']
    #allocation7 [shape = 'u8[16384]{0}', space=vmem, size = 0x4000, scoped, tag = 'output window, operand 0']
    %7 = vsyncpa [#allocation3], 0
    %s8 = scalar_lea.sflag [#allocation3], 1
    %9 = vsyncpa %s8, 0
    %10 = vsyncpa [#allocation6], 0
    %s11 = scalar_lea.sflag [#allocation6], 1
    %12 = vsyncpa %s11, 0
    %13 = vsyncpa [#allocation4], 0
    %s14 = scalar_lea.sflag [#allocation4], 1
    %15 = vsyncpa %s14, 0
    loop: start=0, step=1, limit=6
    $region2: #{tpu_custom_call.1} parent=1 // loop_pre_header
      _
    $region3: #{tpu_custom_call.1} parent=1 // loop_header
      %s17 = sphi 0, %s21
      %p18 = scmp.ge.s32.totalorder %s17, 6
      %s24 = sphi 0, %s36
      %s25 = sphi 0, %s32
      %s26 = sphi 0, %s24
      %s27 = sphi 0, %s25
      %s28 = sphi 0, %s26
      %s29 = sphi 0, %s27
      %s41 = sphi 0, %s43
      %s44 = sphi 0, %s41
      %s45 = sphi 0, %s44
      %s61 = sphi 0, %s45
      %s67 = sphi 0, %s69
      %s70 = sphi 0, %s67
      %s71 = sphi 0, %s70
      %s87 = sphi 0, %s71
      %s95 = sphi 0, %s97
      %s98 = sphi 0, %s95
      %s99 = sphi 0, %s98
      %s115 = sphi 0, %s99
    $region4: #{tpu_custom_call.1} parent=1 // loop_header_branch
      %20 = sbr.rel (%p18) target = $region8
    $region5: #{tpu_custom_call.1} parent=1 // loop_body
      %s22 = ssub.s32 %s17, 1
      %s23 = ssub.s32 %s17, 2
      %s30 = sadd.s32 1, %s25
      %p31 = scmp.ge.s32.totalorder %s30, 2
      %s32 = scalar_select %p31, 0, %s30
      %s33 = sadd.s32 1, %s24
      %s34 = scalar_select %p31, %s33, %s24
      %p35 = scmp.ge.s32.totalorder %s34, 2
      %s36 = scalar_select %p35, 0, %s34
      %s37 = ssub.s32 %s25, %s32
      %s38 = ssub.s32 %s24, %s36
      %s39 = sor.u32 %s37, %s38
      %p40 = scmp.eq.s32.totalorder %s39, 0
      %s42 = sadd.s32 %s41, 1
      %s43 = scalar_select %p40, %s41, %s42
      %p46 = pneg %p40
      %p47 = scmp.eq.s32.totalorder %s17, 3
      %p48 = por %p46, %p47
      %p49 = scmp.ne.s32.totalorder %s41, %s44
      %p50 = scmp.eq.s32.totalorder %s17, 0
      %p51 = por %p49, %p50
      %p52 = scmp.ne.s32.totalorder %s41, %s44
      %p53 = scmp.eq.s32.totalorder %s22, 3
      %p54 = por %p52, %p53
      %p55 = scmp.ne.s32.totalorder %s44, %s45
      %p56 = scmp.eq.s32.totalorder %s22, 0
      %p57 = por %p55, %p56
      %p58 = scmp.ne.s32.totalorder %s44, %s45
      %p59 = scmp.eq.s32.totalorder %s23, 3
      %p60 = por %p58, %p59
      %p62 = scmp.ne.s32.totalorder %s45, %s61
      %p63 = scmp.eq.s32.totalorder %s23, 0
      %p64 = por %p62, %p63
      %s65 = ssub.s32 %s24, %s36
      %p66 = scmp.eq.s32.totalorder %s65, 0
      %s68 = sadd.s32 %s67, 1
      %s69 = scalar_select %p66, %s67, %s68
      %p72 = pneg %p66
      %p73 = scmp.eq.s32.totalorder %s17, 3
      %p74 = por %p72, %p73
      %p75 = scmp.ne.s32.totalorder %s67, %s70
      %p76 = scmp.eq.s32.totalorder %s17, 0
      %p77 = por %p75, %p76
      %p78 = scmp.ne.s32.totalorder %s67, %s70
      %p79 = scmp.eq.s32.totalorder %s22, 3
      %p80 = por %p78, %p79
      %p81 = scmp.ne.s32.totalorder %s70, %s71
      %p82 = scmp.eq.s32.totalorder %s22, 0
      %p83 = por %p81, %p82
      %p84 = scmp.ne.s32.totalorder %s70, %s71
      %p85 = scmp.eq.s32.totalorder %s23, 3
      %p86 = por %p84, %p85
      %p88 = scmp.ne.s32.totalorder %s71, %s87
      %p89 = scmp.eq.s32.totalorder %s23, 0
      %p90 = por %p88, %p89
      %s91 = ssub.s32 %s25, %s32
      %s92 = ssub.s32 %s24, %s36
      %s93 = sor.u32 %s91, %s92
      %p94 = scmp.eq.s32.totalorder %s93, 0
      %s96 = sadd.s32 %s95, 1
      %s97 = scalar_select %p94, %s95, %s96
      %p100 = pneg %p94
      %p101 = scmp.eq.s32.totalorder %s17, 3
      %p102 = por %p100, %p101
      %p103 = scmp.ne.s32.totalorder %s95, %s98
      %p104 = scmp.eq.s32.totalorder %s17, 0
      %p105 = por %p103, %p104
      %p106 = scmp.ne.s32.totalorder %s95, %s98
      %p107 = scmp.eq.s32.totalorder %s22, 3
      %p108 = por %p106, %p107
      %p109 = scmp.ne.s32.totalorder %s98, %s99
      %p110 = scmp.eq.s32.totalorder %s22, 0
      %p111 = por %p109, %p110
      %p112 = scmp.ne.s32.totalorder %s98, %s99
      %p113 = scmp.eq.s32.totalorder %s23, 3
      %p114 = por %p112, %p113
      %p116 = scmp.ne.s32.totalorder %s99, %s115
      %p117 = scmp.eq.s32.totalorder %s23, 0
      %p118 = por %p116, %p117
      %p119 = scmp.le.s32.totalorder 1, %s17
      %p120 = scmp.lt.s32.totalorder %s17, 5
      %p121 = pnand %p119, %p120
      %p122 = pneg %p121
      // Predicated region
      $region9: #{tpu_custom_call.1} parent=5 // pred_check
        _
      $region10: #{tpu_custom_call.1} parent=5 // pred_check_branch
        %124 = sbr.rel (%p121) target = $region12
      $region11: #{tpu_custom_call.1} parent=5 // pred_region
        %s125 = ssub.s32 %s17, 1
      $region12: #{tpu_custom_call.1} parent=5 // pred_fallthru
        _
      %p126 = scmp.lt.s32.totalorder %s17, 4
      // Predicated region
      $region13: #{tpu_custom_call.1} parent=5 // pred_check
        %p127 = pneg %p126
      $region14: #{tpu_custom_call.1} parent=5 // pred_check_branch
        %129 = sbr.rel (%p127) target = $region16
      $region15: #{tpu_custom_call.1} parent=5 // pred_region
        // Predicated region
        $region17: #{tpu_custom_call.1} parent=15 // pred_check
          %p130 = pneg %p51
        $region18: #{tpu_custom_call.1} parent=15 // pred_check_branch
          %132 = sbr.rel (%p130) target = $region20
        $region19: #{tpu_custom_call.1} parent=15 // pred_region
          %s133 = sand.u32 %s41, 1
          %s134 = scalar_lea.sflag [#allocation3], %s133
          %s135 = sand.u32 %s41, 1
          %s136 = smul.addr %s135, 16
          %s137 = scalar_lea.vmem [#allocation2], %s136
          %s139 = ssub.s32 256, 256
          %140 = vsyncadd %s134, %s139
          %s141 = smul.addr %s24, 2
          %s142 = smul.addr %s25, 4
          %s143 = sadd.s32 %s141, %s142
          %s144 = smul.addr %s143, 128
          %s145 = scalar_lea.hbm %s0, %s144
          %s147 = sshll.u32 %s137, 4
          %s148 = int_to_ptr.vmem [resolvable:$true] %s147
          %150 = dma.hbm_to_vmem [thread:$0]  %s145, 256, %s148, %s134
        $region20: #{tpu_custom_call.1} parent=15 // pred_fallthru
          _
        // Predicated region
        $region21: #{tpu_custom_call.1} parent=15 // pred_check
          %p151 = pneg %p77
        $region22: #{tpu_custom_call.1} parent=15 // pred_check_branch
          %153 = sbr.rel (%p151) target = $region24
        $region23: #{tpu_custom_call.1} parent=15 // pred_region
          %s154 = sand.u32 %s67, 1
          %s155 = scalar_lea.sflag [#allocation6], %s154
          %s156 = sand.u32 %s67, 1
          %s157 = smul.addr %s156, 16
          %s158 = scalar_lea.vmem [#allocation5], %s157
          %s160 = ssub.s32 256, 256
          %161 = vsyncadd %s155, %s160
          %s162 = smul.addr %s24, 2
          %s163 = smul.addr %s162, 128
          %s164 = scalar_lea.hbm %s1, %s163
          %s166 = sshll.u32 %s158, 4
          %s167 = int_to_ptr.vmem [resolvable:$true] %s166
          %169 = dma.hbm_to_vmem [thread:$0]  %s164, 256, %s167, %s155
        $region24: #{tpu_custom_call.1} parent=15 // pred_fallthru
          _
      $region16: #{tpu_custom_call.1} parent=5 // pred_fallthru
        _
      %p170 = scmp.le.s32.totalorder 1, %s17
      %p171 = scmp.lt.s32.totalorder %s17, 5
      %p172 = pnand %p170, %p171
      %p173 = pneg %p172
      // Predicated region
      $region25: #{tpu_custom_call.1} parent=5 // pred_check
        _
      $region26: #{tpu_custom_call.1} parent=5 // pred_check_branch
        %175 = sbr.rel (%p172) target = $region28
      $region27: #{tpu_custom_call.1} parent=5 // pred_region
        %s176 = ssub.s32 %s17, 1
        %s177 = sand.u32 %s44, 1
        %s178 = scalar_lea.sflag [#allocation3], %s177
        %s179 = sand.u32 %s44, 1
        %s180 = smul.addr %s179, 16
        %s181 = scalar_lea.vmem [#allocation2], %s180
        // Predicated region
        $region29: #{tpu_custom_call.1} parent=27 // pred_check
          %p182 = pneg %p57
        $region30: #{tpu_custom_call.1} parent=27 // pred_check_branch
          %184 = sbr.rel (%p182) target = $region32
        $region31: #{tpu_custom_call.1} parent=27 // pred_region
          %185 = dma.done %s178, 256
        $region32: #{tpu_custom_call.1} parent=27 // pred_fallthru
          _
        %s186 = sand.u32 %s70, 1
        %s187 = scalar_lea.sflag [#allocation6], %s186
        %s188 = sand.u32 %s70, 1
        %s189 = smul.addr %s188, 16
        %s190 = scalar_lea.vmem [#allocation5], %s189
        // Predicated region
        $region33: #{tpu_custom_call.1} parent=27 // pred_check
          %p191 = pneg %p83
        $region34: #{tpu_custom_call.1} parent=27 // pred_check_branch
          %193 = sbr.rel (%p191) target = $region36
        $region35: #{tpu_custom_call.1} parent=27 // pred_region
          %194 = dma.done %s187, 256
        $region36: #{tpu_custom_call.1} parent=27 // pred_fallthru
          _
        %s195 = sand.u32 %s44, 1
        %s196 = scalar_lea.sflag [#allocation3], %s195
        %s197 = sand.u32 %s44, 1
        %s198 = smul.addr %s197, 16
        %s199 = scalar_lea.vmem [#allocation2], %s198
        %p200 = pneg %p57
        %p201 = pneg %p54
        %s202 = sand.u32 %s70, 1
        %s203 = scalar_lea.sflag [#allocation6], %s202
        %s204 = sand.u32 %s70, 1
        %s205 = smul.addr %s204, 16
        %s206 = scalar_lea.vmem [#allocation5], %s205
        %p207 = pneg %p83
        %p208 = pneg %p80
        %p209 = pneg %p111
        %p210 = pneg %p108
        %s211 = sand.u32 %s98, 1
        %s212 = scalar_lea.sflag [#allocation4], %s211
        %s213 = sand.u32 %s98, 1
        %s214 = smul.addr %s213, 16
        %s215 = scalar_lea.vmem [#allocation7], %s214
        %v216 = vld [vmem:[%s181] sm:$0xff]
        %v217 = vld [vmem:[%s181 + $0x8] sm:$0xff]
        %v218 = vld [vmem:[%s190] sm:$0xff]
        %v219 = vld [vmem:[%s190 + $0x8] sm:$0xff]
        %v220 = vmul.f32 %v216, %v218
        %v221 = vmul.f32 %v217, %v219
        %222 = vst [vmem:[%s215] sm:$0xff] %v220
        %223 = vst [vmem:[%s215 + $0x8] sm:$0xff] %v221
        %s224 = sand.u32 %s98, 1
        %s225 = scalar_lea.sflag [#allocation4], %s224
        %s226 = sand.u32 %s98, 1
        %s227 = smul.addr %s226, 16
        %s228 = scalar_lea.vmem [#allocation7], %s227
        // Predicated region
        $region37: #{tpu_custom_call.1} parent=27 // pred_check
          %p229 = pneg %p108
        $region38: #{tpu_custom_call.1} parent=27 // pred_check_branch
          %231 = sbr.rel (%p229) target = $region40
        $region39: #{tpu_custom_call.1} parent=27 // pred_region
          %s233 = ssub.s32 256, 256
          %234 = vsyncadd %s225, %s233
          %s235 = smul.addr %s26, 2
          %s236 = smul.addr %s27, 4
          %s237 = sadd.s32 %s235, %s236
          %s238 = smul.addr %s237, 128
          %s239 = scalar_lea.hbm %s2, %s238
          %s241 = sshll.u32 %s228, 4
          %s242 = int_to_ptr.vmem [resolvable:$true] %s241
          %244 = dma.vmem_to_hbm [thread:$0]  %s242, 256, %s239, %s225
        $region40: #{tpu_custom_call.1} parent=27 // pred_fallthru
          _
      $region28: #{tpu_custom_call.1} parent=5 // pred_fallthru
        _
      %p245 = scmp.le.s32.totalorder 2, %s17
      // Predicated region
      $region41: #{tpu_custom_call.1} parent=5 // pred_check
        %p246 = pneg %p245
      $region42: #{tpu_custom_call.1} parent=5 // pred_check_branch
        %248 = sbr.rel (%p246) target = $region44
      $region43: #{tpu_custom_call.1} parent=5 // pred_region
        %s249 = ssub.s32 %s17, 2
        // Predicated region
        $region45: #{tpu_custom_call.1} parent=43 // pred_check
          %p250 = pneg %p114
        $region46: #{tpu_custom_call.1} parent=43 // pred_check_branch
          %252 = sbr.rel (%p250) target = $region48
        $region47: #{tpu_custom_call.1} parent=43 // pred_region
          %s253 = sand.u32 %s99, 1
          %s254 = scalar_lea.sflag [#allocation4], %s253
          %s255 = sand.u32 %s99, 1
          %s256 = smul.addr %s255, 16
          %s257 = scalar_lea.vmem [#allocation7], %s256
          %258 = dma.done %s254, 256
        $region48: #{tpu_custom_call.1} parent=43 // pred_fallthru
          _
      $region44: #{tpu_custom_call.1} parent=5 // pred_fallthru
        _
    $region6: #{tpu_custom_call.1} parent=1 // loop_footer
      %s21 = sadd.s32 1, %s17
    $region7: #{tpu_custom_call.1} parent=1 // loop_footer_branch
      %16 = sbr.rel target = $region3
    $region8: #{tpu_custom_call.1} parent=1 // loop_exit
      _
    %259 = vsyncpa [#allocation3], 1
    %s260 = scalar_lea.sflag [#allocation3], 1
    %261 = vsyncpa %s260, 1
    %262 = vsyncpa [#allocation6], 1
    %s263 = scalar_lea.sflag [#allocation6], 1
    %264 = vsyncpa %s263, 1
    %265 = vsyncpa [#allocation4], 1
    %s266 = scalar_lea.sflag [#allocation4], 1
    %267 = vsyncpa %s266, 1

</llo_original>
